<compile_context>
chip_gen: v5e
topology: v5e:2x2
jax: 0.10.0
libtpu: 0.0.40
codegen_flags: <defaults>
</compile_context>

<pallas_src>
import math

import jax
import jax.numpy as jnp
import numpy as np
from jax import lax
from jax.experimental import pallas as pl
from jax.experimental.pallas import tpu as pltpu

# ----------------------------- module configuration --------------------------
EMB_DIM_IN = 33                  # constructor arg `emb_dim`
EMB_DIM = EMB_DIM_IN - 1         # self.emb_dim = 32
ASPECT_RATIO = 2
EMB_H = int(math.sqrt(EMB_DIM / ASPECT_RATIO))   # 4
EMB_W = EMB_H * ASPECT_RATIO                     # 8
FILTER = 3
STRIDE = 1
PAD = 0
OUT_CH = 32
OH = (EMB_H * 2 - FILTER + 2 * PAD) // STRIDE + 1   # 6
OW = (EMB_W - FILTER + 2 * PAD) // STRIDE + 1       # 6
FEAT = OUT_CH * OH * OW                             # 1152
IMG = 2 * EMB_H * EMB_W                             # 64 pixels per stacked image
OUT_PAD = 128                                       # lane-dense output width
BN_EPS = 1e-5
BN_SCALE = 1.0 / math.sqrt(1.0 + BN_EPS)            # eval-mode BN (mean=0, var=1)
TB_MAX = 256                                        # batch tile (fits v7x 64 MiB easily)

# TODO(synk): training-mode Dropout2d/Dropout and batch-statistics BatchNorm are
# stochastic / batch-dependent; eval-mode (inference) semantics are implemented.


# ----------------------------------- kernel ----------------------------------
def _conve_fused_kernel(x_ref, wt_ref, bt_ref, wp_ref, bp_ref, o_ref):
    # x_ref:  (TB, 64)        raw stacked image rows
    # wt_ref: (64, 1152)      Toeplitz-lowered conv weight (channel-major features)
    # bt_ref: (1, 1152)       conv bias broadcast per feature
    # wp_ref: (1152, 128)     projection weight, col 0 + cols 33..127 are zero
    # bp_ref: (1, 128)        projection bias, same padding
    # o_ref:  (TB, 128)       lane-dense output, col 0 = ones column
    feat = jnp.dot(x_ref[...], wt_ref[...], preferred_element_type=jnp.float32)
    feat = jnp.maximum((feat + bt_ref[...]) * BN_SCALE, 0.0)       # conv + bn1 + ReLU
    out = jnp.dot(feat, wp_ref[...], preferred_element_type=jnp.float32)
    out = jnp.maximum((out + bp_ref[...]) * BN_SCALE, 0.0)         # proj + bn2 + ReLU
    col = lax.broadcasted_iota(jnp.int32, out.shape, 1)
    o_ref[...] = jnp.where(col == 0, 1.0, out)                     # cat([ones, out], -1)


# --------------------------- one-time weight preprocessing --------------------
def prepare_params(conv_w, conv_b, proj_w, proj_b):
    """Hoisted out of the traced forward: build the Toeplitz conv weight, the
    broadcast conv bias, and the lane-padded projection weight/bias."""
    # Toeplitz lowering: feat[b, c*36 + oh*6 + ow] = sum_{di,dj} x[b,(oh+di)*8+(ow+dj)] * w[c,0,di,dj]
    c_i, oh_i, ow_i, di_i, dj_i = np.meshgrid(
        np.arange(OUT_CH), np.arange(OH), np.arange(OW),
        np.arange(FILTER), np.arange(FILTER), indexing="ij")
    rows = ((oh_i + di_i) * EMB_W + (ow_i + dj_i)).ravel()
    cols = (c_i * (OH * OW) + oh_i * OW + ow_i).ravel()
    vals = jnp.asarray(conv_w)[c_i.ravel(), 0, di_i.ravel(), dj_i.ravel()]
    w_toe = jnp.zeros((IMG, FEAT), jnp.float32).at[rows, cols].set(vals)

    b_toe = jnp.repeat(conv_b.astype(jnp.float32), OH * OW).reshape(1, FEAT)

    # Projection weight/bias padded to 128 lanes; col 0 reserved for the ones column.
    w_pad = jnp.zeros((FEAT, OUT_PAD), jnp.float32).at[:, 1:1 + EMB_DIM].set(
        proj_w.T.astype(jnp.float32))
    b_pad = jnp.zeros((1, OUT_PAD), jnp.float32).at[0, 1:1 + EMB_DIM].set(
        proj_b.astype(jnp.float32))
    return w_toe, b_toe, w_pad, b_pad


# ----------------------------------- wrapper ----------------------------------
def _round_up(x, m):
    return (x + m - 1) // m * m


def conve_scorer_forward(s_emb, p_emb, params):
    w_toe, b_toe, w_pad, b_pad = params
    B = p_emb.shape[0]

    # Row-major flatten of the stacked (2H, W) image == concat of the two embeddings
    # (minus their first column) along the last axis.
    x = jnp.concatenate([s_emb[:, 1:], p_emb[:, 1:]], axis=-1).astype(jnp.float32)  # (B, 64)

    tb = min(TB_MAX, _round_up(B, 8))
    bp = _round_up(B, tb)
    if bp != B:
        x = jnp.pad(x, ((0, bp - B), (0, 0)))

    out = pl.pallas_call(
        _conve_fused_kernel,
        out_shape=jax.ShapeDtypeStruct((bp, OUT_PAD), jnp.float32),
        grid=(bp // tb,),
        in_specs=[
            pl.BlockSpec((tb, IMG), lambda i: (i, 0)),        # batch-tiled image rows
            pl.BlockSpec((IMG, FEAT), lambda i: (0, 0)),      # VMEM-resident weights
            pl.BlockSpec((1, FEAT), lambda i: (0, 0)),
            pl.BlockSpec((FEAT, OUT_PAD), lambda i: (0, 0)),
            pl.BlockSpec((1, OUT_PAD), lambda i: (0, 0)),
        ],
        out_specs=pl.BlockSpec((tb, OUT_PAD), lambda i: (i, 0)),
        compiler_params=pltpu.CompilerParams(
            dimension_semantics=("parallel",)),
    )(x, w_toe, b_toe, w_pad, b_pad)

    return out[:B, :EMB_DIM_IN]


# ------------------------- plain-JAX reference (for checking) -----------------
def reference_forward(s_emb, p_emb, conv_w, conv_b, proj_w, proj_b):
    B = p_emb.shape[0]
    s2 = s_emb[:, 1:].reshape(B, 1, EMB_H, EMB_W)
    p2 = p_emb[:, 1:].reshape(B, 1, EMB_H, EMB_W)
    x = jnp.concatenate([s2, p2], axis=2)                    # (B, 1, 2H, W) NCHW
    out = lax.conv_general_dilated(
        x, conv_w, window_strides=(STRIDE, STRIDE), padding="VALID",
        dimension_numbers=("NCHW", "OIHW", "NCHW"))
    out = out + conv_b.reshape(1, OUT_CH, 1, 1)
    out = jnp.maximum(out * BN_SCALE, 0.0)
    out = out.reshape(B, -1)
    out = out @ proj_w.T + proj_b
    out = jnp.maximum(out * BN_SCALE, 0.0)
    return jnp.concatenate([jnp.ones((B, 1), jnp.float32), out], axis=-1)


# ------------------------------------ main -------------------------------------
if __name__ == "__main__":
    key = jax.random.PRNGKey(0)
    k1, k2, k3, k4, k5, k6 = jax.random.split(key, 6)
    B = 2

    s_emb = jax.random.normal(k1, (B, EMB_DIM_IN), jnp.float32)
    p_emb = jax.random.normal(k2, (B, EMB_DIM_IN), jnp.float32)
    conv_w = jax.random.normal(k3, (OUT_CH, 1, FILTER, FILTER), jnp.float32) * 0.1
    conv_b = jax.random.normal(k4, (OUT_CH,), jnp.float32) * 0.1
    proj_w = jax.random.normal(k5, (EMB_DIM, FEAT), jnp.float32) * 0.02
    proj_b = jax.random.normal(k6, (EMB_DIM,), jnp.float32) * 0.1

    # One-time weight preprocessing (hoisted out of the per-call forward).
    params = jax.block_until_ready(prepare_params(conv_w, conv_b, proj_w, proj_b))

    out = jax.block_until_ready(conve_scorer_forward(s_emb, p_emb, params))
    ref = jax.block_until_ready(
        reference_forward(s_emb, p_emb, conv_w, conv_b, proj_w, proj_b))

    assert out.shape == (B, EMB_DIM_IN), out.shape
    np.testing.assert_allclose(np.asarray(out), np.asarray(ref), rtol=2e-3, atol=2e-3)
    print("KERNEL_OK")
</pallas_src>

<mosaic_0001>
module attributes {stable_mosaic.version = 11 : i64} {
  func.func @_conve_fused_kernel(%arg0: i32, %arg1: memref<8x64xf32, #tpu.memory_space<vmem>>, %arg2: memref<64x1152xf32, #tpu.memory_space<vmem>>, %arg3: memref<1x1152xf32, #tpu.memory_space<vmem>>, %arg4: memref<1152x128xf32, #tpu.memory_space<vmem>>, %arg5: memref<1x128xf32, #tpu.memory_space<vmem>>, %arg6: memref<8x128xf32, #tpu.memory_space<vmem>>) attributes {dimension_semantics = [#tpu.dimension_semantics<parallel>], iteration_bounds = array<i64: 1>, scalar_prefetch = 0 : i64, scratch_operands = 0 : i64, tpu.core_type = #tpu.core_type<tc>, window_params = [{transform_indices = @transform_0, window_bounds = array<i64: 8, 64>}, {pipeline_mode = #tpu.pipeline_mode<synchronous>, transform_indices = @transform_1, window_bounds = array<i64: 64, 1152>}, {pipeline_mode = #tpu.pipeline_mode<synchronous>, transform_indices = @transform_2, window_bounds = array<i64: 1, 1152>}, {pipeline_mode = #tpu.pipeline_mode<synchronous>, transform_indices = @transform_3, window_bounds = array<i64: 1152, 128>}, {pipeline_mode = #tpu.pipeline_mode<synchronous>, transform_indices = @transform_4, window_bounds = array<i64: 1, 128>}, {transform_indices = @transform_5, window_bounds = array<i64: 8, 128>}]} {
    %c0 = arith.constant 0 : index
    %c0_0 = arith.constant 0 : index
    %0 = vector.load %arg1[%c0, %c0_0] : memref<8x64xf32, #tpu.memory_space<vmem>>, vector<8x64xf32>
    %c0_1 = arith.constant 0 : index
    %c0_2 = arith.constant 0 : index
    %1 = vector.load %arg2[%c0_1, %c0_2] : memref<64x1152xf32, #tpu.memory_space<vmem>>, vector<64x1152xf32>
    %cst = arith.constant dense<0.000000e+00> : vector<8x1152xf32>
    %2 = tpu.matmul %0, %1, %cst {dimension_numbers = #tpu.dot_dimension_numbers<[1], [0], [0], [1], [0, 0, 1, 1], [], []>} : vector<8x64xf32>, vector<64x1152xf32>, vector<8x1152xf32> -> vector<8x1152xf32>
    %c0_3 = arith.constant 0 : index
    %c0_4 = arith.constant 0 : index
    %3 = vector.load %arg3[%c0_3, %c0_4] : memref<1x1152xf32, #tpu.memory_space<vmem>>, vector<1x1152xf32>
    %4 = vector.broadcast %3 : vector<1x1152xf32> to vector<8x1152xf32>
    %5 = arith.addf %2, %4 : vector<8x1152xf32>
    %cst_5 = arith.constant 0.999994993 : f32
    %6 = vector.broadcast %cst_5 : f32 to vector<8x1152xf32>
    %7 = arith.mulf %5, %6 : vector<8x1152xf32>
    %cst_6 = arith.constant 0.000000e+00 : f32
    %8 = vector.broadcast %cst_6 : f32 to vector<8x1152xf32>
    %9 = arith.maximumf %7, %8 : vector<8x1152xf32>
    %c0_7 = arith.constant 0 : index
    %c0_8 = arith.constant 0 : index
    %10 = vector.load %arg4[%c0_7, %c0_8] : memref<1152x128xf32, #tpu.memory_space<vmem>>, vector<1152x128xf32>
    %cst_9 = arith.constant dense<0.000000e+00> : vector<8x128xf32>
    %11 = tpu.matmul %9, %10, %cst_9 {dimension_numbers = #tpu.dot_dimension_numbers<[1], [0], [0], [1], [0, 0, 1, 1], [], []>} : vector<8x1152xf32>, vector<1152x128xf32>, vector<8x128xf32> -> vector<8x128xf32>
    %c0_10 = arith.constant 0 : index
    %c0_11 = arith.constant 0 : index
    %12 = vector.load %arg5[%c0_10, %c0_11] : memref<1x128xf32, #tpu.memory_space<vmem>>, vector<1x128xf32>
    %13 = vector.broadcast %12 : vector<1x128xf32> to vector<8x128xf32>
    %14 = arith.addf %11, %13 : vector<8x128xf32>
    %cst_12 = arith.constant 0.999994993 : f32
    %15 = vector.broadcast %cst_12 : f32 to vector<8x128xf32>
    %16 = arith.mulf %14, %15 : vector<8x128xf32>
    %cst_13 = arith.constant 0.000000e+00 : f32
    %17 = vector.broadcast %cst_13 : f32 to vector<8x128xf32>
    %18 = arith.maximumf %16, %17 : vector<8x128xf32>
    %19 = tpu.iota {dimensions = array<i32: 1>} : vector<8x128xi32>
    %c0_i32 = arith.constant 0 : i32
    %20 = vector.broadcast %c0_i32 : i32 to vector<8x128xi32>
    %21 = arith.cmpi eq, %19, %20 : vector<8x128xi32>
    %cst_14 = arith.constant 1.000000e+00 : f32
    %22 = vector.broadcast %cst_14 : f32 to vector<8x128xf32>
    %23 = arith.select %21, %22, %18 : vector<8x128xi1>, vector<8x128xf32>
    %c0_15 = arith.constant 0 : index
    %c0_16 = arith.constant 0 : index
    %24 = vector.load %arg6[%c0_15, %c0_16] : memref<8x128xf32, #tpu.memory_space<vmem>>, vector<8x128xf32>
    tpu.vector_store %arg6[%c0_15, %c0_16], %23 {strides = array<i32>} : memref<8x128xf32, #tpu.memory_space<vmem>>, vector<8x128xf32>,
    return
  }
  func.func @transform_0(%arg0: i32) -> (i32, i32) {
    %c0_i32 = arith.constant 0 : i32
    %c0_i32_0 = arith.constant 0 : i32
    return %arg0, %c0_i32 : i32, i32
  }
  func.func @transform_1(%arg0: i32) -> (i32, i32) {
    %c0_i32 = arith.constant 0 : i32
    %c0_i32_0 = arith.constant 0 : i32
    %c0_i32_1 = arith.constant 0 : i32
    return %c0_i32, %c0_i32_0 : i32, i32
  }
  func.func @transform_2(%arg0: i32) -> (i32, i32) {
    %c0_i32 = arith.constant 0 : i32
    %c0_i32_0 = arith.constant 0 : i32
    %c0_i32_1 = arith.constant 0 : i32
    return %c0_i32, %c0_i32_0 : i32, i32
  }
  func.func @transform_3(%arg0: i32) -> (i32, i32) {
    %c0_i32 = arith.constant 0 : i32
    %c0_i32_0 = arith.constant 0 : i32
    %c0_i32_1 = arith.constant 0 : i32
    return %c0_i32, %c0_i32_0 : i32, i32
  }
  func.func @transform_4(%arg0: i32) -> (i32, i32) {
    %c0_i32 = arith.constant 0 : i32
    %c0_i32_0 = arith.constant 0 : i32
    %c0_i32_1 = arith.constant 0 : i32
    return %c0_i32, %c0_i32_0 : i32, i32
  }
  func.func @transform_5(%arg0: i32) -> (i32, i32) {
    %c0_i32 = arith.constant 0 : i32
    %c0_i32_0 = arith.constant 0 : i32
    return %arg0, %c0_i32 : i32, i32
  }
}

</mosaic_0001>

<llo_original>
// kernel: tpu_custom_call.1
$region0: #{tpu_custom_call.1}
  #allocation0 [shape = 'u32[]', space=smem, size = 0x4, offset = 0x4, fixed_abs, tag = 'smem constant byte address 0x4 - core index']
  #allocation1 [shape = 'u32[72,128]{1,0:T(1,128)}', space=vmem, size = 0x9000, scoped, tag = 'internal scratch']
  %s0 = inlined_call_operand.hbm [shape: f32[8,64], index: 0, kind: input, shape index: {}]
  %s1 = inlined_call_operand.hbm [shape: f32[64,1152], index: 1, kind: input, shape index: {}]
  %s2 = inlined_call_operand.hbm [shape: f32[1,1152], index: 2, kind: input, shape index: {}]
  %s3 = inlined_call_operand.hbm [shape: f32[1152,128], index: 3, kind: input, shape index: {}]
  %s4 = inlined_call_operand.vmem [shape: f32[1,128], index: 4, kind: input, shape index: {}]
  %s5 = inlined_call_operand.hbm [shape: f32[8,128], index: 5, kind: output, shape index: {}]
  %s6 = sld [smem:[#allocation0]]
  $region46: #{tpu_custom_call.1} parent=0
    _
  %s8 = ssub.s32 1, %s6
  %s9 = scalar_select 0, %s8, %s6
  $region1: #{tpu_custom_call.1} parent=0
    #allocation2 [shape = 'u8[4096]{0}', space=vmem, size = 0x1000, scoped, tag = 'input window, operand 0, single buffered']
    #allocation3 [shape = 's32[1]{0}', space=sflag, size = 0x4, scoped, tag = 'scoped memory for tpu_custom_call.1']
    #allocation4 [shape = 's32[1]{0}', space=sflag, size = 0x4, scoped, tag = 'scoped memory for tpu_custom_call.1']
    #allocation5 [shape = 'u8[294912]{0}', space=vmem, size = 0x48000, scoped, tag = 'input window, operand 1, single buffered']
    #allocation6 [shape = 's32[1]{0}', space=sflag, size = 0x4, scoped, tag = 'scoped memory for tpu_custom_call.1']
    #allocation7 [shape = 'u8[4608]{0}', space=vmem, size = 0x1400, scoped, tag = 'input window, operand 2, single buffered']
    #allocation8 [shape = 'u8[589824]{0}', space=vmem, size = 0x90000, scoped, tag = 'input window, operand 3, single buffered']
    #allocation9 [shape = 's32[1]{0}', space=sflag, size = 0x4, scoped, tag = 'scoped memory for tpu_custom_call.1']
    #allocation10 [shape = 'u8[4096]{0}', space=vmem, size = 0x1000, scoped, tag = 'output window, operand 0, single buffered']
    %10 = vsyncpa [#allocation3], 0
    %11 = vsyncpa [#allocation6], 0
    %12 = vsyncpa [#allocation9], 0
    %13 = vsyncpa [#allocation4], 0
    // Predicated region
    $region2: #{tpu_custom_call.1} parent=1 // pred_check
      _
    $region3: #{tpu_custom_call.1} parent=1 // pred_check_branch
      %15 = sbr.rel (0) target = $region5
    $region4: #{tpu_custom_call.1} parent=1 // pred_region
      %17 = vsyncadd [#allocation3], 0
      %s19 = sshll.u32 %s0, 4
      %s20 = int_to_ptr.hbm [resolvable:$true] %s19
      %s21 = sshll.u32 [#allocation2], 4
      %s22 = int_to_ptr.vmem [resolvable:$true] %s21
      %24 = dma.hbm_to_vmem [thread:$0]  %s20, 128, %s22, [#allocation3]
    $region5: #{tpu_custom_call.1} parent=1 // pred_fallthru
      _
    // Predicated region
    $region6: #{tpu_custom_call.1} parent=1 // pred_check
      _
    $region7: #{tpu_custom_call.1} parent=1 // pred_check_branch
      %26 = sbr.rel (0) target = $region9
    $region8: #{tpu_custom_call.1} parent=1 // pred_region
      %28 = vsyncadd [#allocation6], 0
      %s29 = sshll.u32 %s1, 4
      %s30 = int_to_ptr.hbm [resolvable:$true] %s29
      %s31 = sshll.u32 [#allocation5], 4
      %s32 = int_to_ptr.vmem [resolvable:$true] %s31
      %37 = dma.hbm_to_vmem [thread:$0]  %s30, 9216, %s32, [#allocation6], 1152, 1152, 72
    $region9: #{tpu_custom_call.1} parent=1 // pred_fallthru
      _
    // Predicated region
    $region10: #{tpu_custom_call.1} parent=1 // pred_check
      _
    $region11: #{tpu_custom_call.1} parent=1 // pred_check_branch
      %39 = sbr.rel (0) target = $region13
    $region12: #{tpu_custom_call.1} parent=1 // pred_region
      %41 = vsyncadd [#allocation6], 0
      %s43 = sshll.u32 %s2, 4
      %s44 = int_to_ptr.hbm [resolvable:$true] %s43
      %s45 = sshll.u32 [#allocation7], 4
      %s46 = int_to_ptr.vmem [resolvable:$true] %s45
      %48 = dma.hbm_to_vmem [thread:$0]  %s44, 144, %s46, [#allocation6]
    $region13: #{tpu_custom_call.1} parent=1 // pred_fallthru
      _
    // Predicated region
    $region14: #{tpu_custom_call.1} parent=1 // pred_check
      _
    $region15: #{tpu_custom_call.1} parent=1 // pred_check_branch
      %50 = sbr.rel (0) target = $region17
    $region16: #{tpu_custom_call.1} parent=1 // pred_region
      %52 = vsyncadd [#allocation9], 0
      %s53 = sshll.u32 %s3, 4
      %s54 = int_to_ptr.hbm [resolvable:$true] %s53
      %s55 = sshll.u32 [#allocation8], 4
      %s56 = int_to_ptr.vmem [resolvable:$true] %s55
      %61 = dma.hbm_to_vmem [thread:$0]  %s54, 18432, %s56, [#allocation9], 128, 128, 8
    $region17: #{tpu_custom_call.1} parent=1 // pred_fallthru
      _
    // Predicated region
    $region18: #{tpu_custom_call.1} parent=1 // pred_check
      _
    $region19: #{tpu_custom_call.1} parent=1 // pred_check_branch
      %63 = sbr.rel (0) target = $region21
    $region20: #{tpu_custom_call.1} parent=1 // pred_region
      _
    $region21: #{tpu_custom_call.1} parent=1 // pred_fallthru
      _
    // Predicated region
    $region22: #{tpu_custom_call.1} parent=1 // pred_check
      _
    $region23: #{tpu_custom_call.1} parent=1 // pred_check_branch
      %65 = sbr.rel (0) target = $region25
    $region24: #{tpu_custom_call.1} parent=1 // pred_region
      %67 = dma.done [#allocation3], 128
    $region25: #{tpu_custom_call.1} parent=1 // pred_fallthru
      _
    // Predicated region
    $region26: #{tpu_custom_call.1} parent=1 // pred_check
      _
    $region27: #{tpu_custom_call.1} parent=1 // pred_check_branch
      %69 = sbr.rel (0) target = $region29
    $region28: #{tpu_custom_call.1} parent=1 // pred_region
      %71 = dma.done [#allocation6], 9216
    $region29: #{tpu_custom_call.1} parent=1 // pred_fallthru
      _
    // Predicated region
    $region30: #{tpu_custom_call.1} parent=1 // pred_check
      _
    $region31: #{tpu_custom_call.1} parent=1 // pred_check_branch
      %73 = sbr.rel (0) target = $region33
    $region32: #{tpu_custom_call.1} parent=1 // pred_region
      %75 = dma.done [#allocation6], 144
    $region33: #{tpu_custom_call.1} parent=1 // pred_fallthru
      _
    // Predicated region
    $region34: #{tpu_custom_call.1} parent=1 // pred_check
      _
    $region35: #{tpu_custom_call.1} parent=1 // pred_check_branch
      %77 = sbr.rel (0) target = $region37
    $region36: #{tpu_custom_call.1} parent=1 // pred_region
      %79 = dma.done [#allocation9], 18432
    $region37: #{tpu_custom_call.1} parent=1 // pred_fallthru
      _
    %v80 = vld [vmem:[#allocation2] sm:$0xff]
    %v81 = vld [vmem:[#allocation5] sm:$0xff]
    %v82 = vld [vmem:[#allocation5 + $0x8] sm:$0xff]
    %v83 = vld [vmem:[#allocation5 + $0x10] sm:$0xff]
    %v84 = vld [vmem:[#allocation5 + $0x18] sm:$0xff]
    %v85 = vld [vmem:[#allocation5 + $0x20] sm:$0xff]
    %v86 = vld [vmem:[#allocation5 + $0x28] sm:$0xff]
    %v87 = vld [vmem:[#allocation5 + $0x30] sm:$0xff]
    %v88 = vld [vmem:[#allocation5 + $0x38] sm:$0xff]
    %v89 = vld [vmem:[#allocation5 + $0x40] sm:$0xff]
    %v90 = vld [vmem:[#allocation5 + $0x48] sm:$0xff]
    %v91 = vld [vmem:[#allocation5 + $0x50] sm:$0xff]
    %v92 = vld [vmem:[#allocation5 + $0x58] sm:$0xff]
    %v93 = vld [vmem:[#allocation5 + $0x60] sm:$0xff]
    %v94 = vld [vmem:[#allocation5 + $0x68] sm:$0xff]
    %v95 = vld [vmem:[#allocation5 + $0x70] sm:$0xff]
    %v96 = vld [vmem:[#allocation5 + $0x78] sm:$0xff]
    %v97 = vld [vmem:[#allocation5 + $0x80] sm:$0xff]
    %v98 = vld [vmem:[#allocation5 + $0x88] sm:$0xff]
    %v99 = vld [vmem:[#allocation5 + $0x90] sm:$0xff]
    %v100 = vld [vmem:[#allocation5 + $0x98] sm:$0xff]
    %v101 = vld [vmem:[#allocation5 + $0xa0] sm:$0xff]
    %v102 = vld [vmem:[#allocation5 + $0xa8] sm:$0xff]
    %v103 = vld [vmem:[#allocation5 + $0xb0] sm:$0xff]
    %v104 = vld [vmem:[#allocation5 + $0xb8] sm:$0xff]
    %v105 = vld [vmem:[#allocation5 + $0xc0] sm:$0xff]
    %v106 = vld [vmem:[#allocation5 + $0xc8] sm:$0xff]
    %v107 = vld [vmem:[#allocation5 + $0xd0] sm:$0xff]
    %v108 = vld [vmem:[#allocation5 + $0xd8] sm:$0xff]
    %v109 = vld [vmem:[#allocation5 + $0xe0] sm:$0xff]
    %v110 = vld [vmem:[#allocation5 + $0xe8] sm:$0xff]
    %v111 = vld [vmem:[#allocation5 + $0xf0] sm:$0xff]
    %v112 = vld [vmem:[#allocation5 + $0xf8] sm:$0xff]
    %v113 = vld [vmem:[#allocation5 + $0x100] sm:$0xff]
    %v114 = vld [vmem:[#allocation5 + $0x108] sm:$0xff]
    %v115 = vld [vmem:[#allocation5 + $0x110] sm:$0xff]
    %v116 = vld [vmem:[#allocation5 + $0x118] sm:$0xff]
    %v117 = vld [vmem:[#allocation5 + $0x120] sm:$0xff]
    %v118 = vld [vmem:[#allocation5 + $0x128] sm:$0xff]
    %v119 = vld [vmem:[#allocation5 + $0x130] sm:$0xff]
    %v120 = vld [vmem:[#allocation5 + $0x138] sm:$0xff]
    %v121 = vld [vmem:[#allocation5 + $0x140] sm:$0xff]
    %v122 = vld [vmem:[#allocation5 + $0x148] sm:$0xff]
    %v123 = vld [vmem:[#allocation5 + $0x150] sm:$0xff]
    %v124 = vld [vmem:[#allocation5 + $0x158] sm:$0xff]
    %v125 = vld [vmem:[#allocation5 + $0x160] sm:$0xff]
    %v126 = vld [vmem:[#allocation5 + $0x168] sm:$0xff]
    %v127 = vld [vmem:[#allocation5 + $0x170] sm:$0xff]
    %v128 = vld [vmem:[#allocation5 + $0x178] sm:$0xff]
    %v129 = vld [vmem:[#allocation5 + $0x180] sm:$0xff]
    %v130 = vld [vmem:[#allocation5 + $0x188] sm:$0xff]
    %v131 = vld [vmem:[#allocation5 + $0x190] sm:$0xff]
    %v132 = vld [vmem:[#allocation5 + $0x198] sm:$0xff]
    %v133 = vld [vmem:[#allocation5 + $0x1a0] sm:$0xff]
    %v134 = vld [vmem:[#allocation5 + $0x1a8] sm:$0xff]
    %v135 = vld [vmem:[#allocation5 + $0x1b0] sm:$0xff]
    %v136 = vld [vmem:[#allocation5 + $0x1b8] sm:$0xff]
    %v137 = vld [vmem:[#allocation5 + $0x1c0] sm:$0xff]
    %v138 = vld [vmem:[#allocation5 + $0x1c8] sm:$0xff]
    %v139 = vld [vmem:[#allocation5 + $0x1d0] sm:$0xff]
    %v140 = vld [vmem:[#allocation5 + $0x1d8] sm:$0xff]
    %v141 = vld [vmem:[#allocation5 + $0x1e0] sm:$0xff]
    %v142 = vld [vmem:[#allocation5 + $0x1e8] sm:$0xff]
    %v143 = vld [vmem:[#allocation5 + $0x1f0] sm:$0xff]
    %v144 = vld [vmem:[#allocation5 + $0x1f8] sm:$0xff]
    %v145 = vld [vmem:[#allocation5 + $0x200] sm:$0xff]
    %v146 = vld [vmem:[#allocation5 + $0x208] sm:$0xff]
    %v147 = vld [vmem:[#allocation5 + $0x210] sm:$0xff]
    %v148 = vld [vmem:[#allocation5 + $0x218] sm:$0xff]
    %v149 = vld [vmem:[#allocation5 + $0x220] sm:$0xff]
    %v150 = vld [vmem:[#allocation5 + $0x228] sm:$0xff]
    %v151 = vld [vmem:[#allocation5 + $0x230] sm:$0xff]
    %v152 = vld [vmem:[#allocation5 + $0x238] sm:$0xff]
    %v153 = vld [vmem:[#allocation7] sm:$0xff]
    %v154 = vld [vmem:[#allocation7 + $0x8] sm:$0x1]
    %v157 = vperm.slane %v153, 0
    %v158 = vperm.slane %v153, 1
    %v159 = vperm.slane %v153, 2
    %v160 = vperm.slane %v153, 3
    %v161 = vperm.slane %v153, 4
    %v162 = vperm.slane %v153, 5
    %v163 = vperm.slane %v153, 6
    %v164 = vperm.slane %v153, 7
    %v165 = vperm.slane %v154, 0
    %vm175 = vcmask 523264
    %v177 = vsel %vm175, %v80, 0
    %179 = vmatpush.msra.mxu0 0.0
    %180 = vmatpush.msra.mxu0 0.0
    %181 = vmatpush.msra.mxu0 0.0
    %182 = vmatpush.msra.mxu0 0.0
    %183 = vmatpush.msra.mxu0 0.0
    %184 = vmatpush.msra.mxu0 0.0
    %185 = vmatpush.msra.mxu0 0.0
    %186 = vmatpush.msra.mxu0 0.0
    %187 = vmatpush.msra.mxu0 %v144
    %188 = vmatpush.msra.mxu0 %v135
    %189 = vmatpush.msra.mxu0 %v126
    %190 = vmatpush.msra.mxu0 %v117
    %191 = vmatpush.msra.mxu0 %v108
    %192 = vmatpush.msra.mxu0 %v99
    %193 = vmatpush.msra.mxu0 %v90
    %194 = vmatpush.msra.mxu0 %v81
    %195 = vmatmul.f32.gmra.mxu0 %v177
    %v196 = vpop.f32.mrf.mxu0
    %v197 = vadd.f32 %v157, %v196
    %198 = vdwg.mxu0
    %199 = vmatpush.msra.mxu0 0.0
    %200 = vmatpush.msra.mxu0 0.0
    %201 = vmatpush.msra.mxu0 0.0
    %202 = vmatpush.msra.mxu0 0.0
    %203 = vmatpush.msra.mxu0 0.0
    %204 = vmatpush.msra.mxu0 0.0
    %205 = vmatpush.msra.mxu0 0.0
    %206 = vmatpush.msra.mxu0 0.0
    %207 = vmatpush.msra.mxu0 %v145
    %208 = vmatpush.msra.mxu0 %v136
    %209 = vmatpush.msra.mxu0 %v127
    %210 = vmatpush.msra.mxu0 %v118
    %211 = vmatpush.msra.mxu0 %v109
    %212 = vmatpush.msra.mxu0 %v100
    %213 = vmatpush.msra.mxu0 %v91
    %214 = vmatpush.msra.mxu0 %v82
    %215 = vmatmul.f32.gmra.mxu0 %v177
    %v216 = vpop.f32.mrf.mxu0
    %v217 = vadd.f32 %v158, %v216
    %218 = vdwg.mxu0
    %219 = vmatpush.msra.mxu0 0.0
    %220 = vmatpush.msra.mxu0 0.0
    %221 = vmatpush.msra.mxu0 0.0
    %222 = vmatpush.msra.mxu0 0.0
    %223 = vmatpush.msra.mxu0 0.0
    %224 = vmatpush.msra.mxu0 0.0
    %225 = vmatpush.msra.mxu0 0.0
    %226 = vmatpush.msra.mxu0 0.0
    %227 = vmatpush.msra.mxu0 %v146
    %228 = vmatpush.msra.mxu0 %v137
    %229 = vmatpush.msra.mxu0 %v128
    %230 = vmatpush.msra.mxu0 %v119
    %231 = vmatpush.msra.mxu0 %v110
    %232 = vmatpush.msra.mxu0 %v101
    %233 = vmatpush.msra.mxu0 %v92
    %234 = vmatpush.msra.mxu0 %v83
    %235 = vmatmul.f32.gmra.mxu0 %v177
    %v236 = vpop.f32.mrf.mxu0
    %v237 = vadd.f32 %v159, %v236
    %238 = vdwg.mxu0
    %239 = vmatpush.msra.mxu0 0.0
    %240 = vmatpush.msra.mxu0 0.0
    %241 = vmatpush.msra.mxu0 0.0
    %242 = vmatpush.msra.mxu0 0.0
    %243 = vmatpush.msra.mxu0 0.0
    %244 = vmatpush.msra.mxu0 0.0
    %245 = vmatpush.msra.mxu0 0.0
    %246 = vmatpush.msra.mxu0 0.0
    %247 = vmatpush.msra.mxu0 %v147
    %248 = vmatpush.msra.mxu0 %v138
    %249 = vmatpush.msra.mxu0 %v129
    %250 = vmatpush.msra.mxu0 %v120
    %251 = vmatpush.msra.mxu0 %v111
    %252 = vmatpush.msra.mxu0 %v102
    %253 = vmatpush.msra.mxu0 %v93
    %254 = vmatpush.msra.mxu0 %v84
    %255 = vmatmul.f32.gmra.mxu0 %v177
    %v256 = vpop.f32.mrf.mxu0
    %v257 = vadd.f32 %v160, %v256
    %258 = vdwg.mxu0
    %259 = vmatpush.msra.mxu0 0.0
    %260 = vmatpush.msra.mxu0 0.0
    %261 = vmatpush.msra.mxu0 0.0
    %262 = vmatpush.msra.mxu0 0.0
    %263 = vmatpush.msra.mxu0 0.0
    %264 = vmatpush.msra.mxu0 0.0
    %265 = vmatpush.msra.mxu0 0.0
    %266 = vmatpush.msra.mxu0 0.0
    %267 = vmatpush.msra.mxu0 %v148
    %268 = vmatpush.msra.mxu0 %v139
    %269 = vmatpush.msra.mxu0 %v130
    %270 = vmatpush.msra.mxu0 %v121
    %271 = vmatpush.msra.mxu0 %v112
    %272 = vmatpush.msra.mxu0 %v103
    %273 = vmatpush.msra.mxu0 %v94
    %274 = vmatpush.msra.mxu0 %v85
    %275 = vmatmul.f32.gmra.mxu0 %v177
    %v276 = vpop.f32.mrf.mxu0
    %v277 = vadd.f32 %v161, %v276
    %278 = vdwg.mxu0
    %279 = vmatpush.msra.mxu0 0.0
    %280 = vmatpush.msra.mxu0 0.0
    %281 = vmatpush.msra.mxu0 0.0
    %282 = vmatpush.msra.mxu0 0.0
    %283 = vmatpush.msra.mxu0 0.0
    %284 = vmatpush.msra.mxu0 0.0
    %285 = vmatpush.msra.mxu0 0.0
    %286 = vmatpush.msra.mxu0 0.0
    %287 = vmatpush.msra.mxu0 %v149
    %288 = vmatpush.msra.mxu0 %v140
    %289 = vmatpush.msra.mxu0 %v131
    %290 = vmatpush.msra.mxu0 %v122
    %291 = vmatpush.msra.mxu0 %v113
    %292 = vmatpush.msra.mxu0 %v104
    %293 = vmatpush.msra.mxu0 %v95
    %294 = vmatpush.msra.mxu0 %v86
    %295 = vmatmul.f32.gmra.mxu0 %v177
    %v296 = vpop.f32.mrf.mxu0
    %v297 = vadd.f32 %v162, %v296
    %298 = vdwg.mxu0
    %299 = vmatpush.msra.mxu0 0.0
    %300 = vmatpush.msra.mxu0 0.0
    %301 = vmatpush.msra.mxu0 0.0
    %302 = vmatpush.msra.mxu0 0.0
    %303 = vmatpush.msra.mxu0 0.0
    %304 = vmatpush.msra.mxu0 0.0
    %305 = vmatpush.msra.mxu0 0.0
    %306 = vmatpush.msra.mxu0 0.0
    %307 = vmatpush.msra.mxu0 %v150
    %308 = vmatpush.msra.mxu0 %v141
    %309 = vmatpush.msra.mxu0 %v132
    %310 = vmatpush.msra.mxu0 %v123
    %311 = vmatpush.msra.mxu0 %v114
    %312 = vmatpush.msra.mxu0 %v105
    %313 = vmatpush.msra.mxu0 %v96
    %314 = vmatpush.msra.mxu0 %v87
    %315 = vmatmul.f32.gmra.mxu0 %v177
    %v316 = vpop.f32.mrf.mxu0
    %v317 = vadd.f32 %v163, %v316
    %318 = vdwg.mxu0
    %319 = vmatpush.msra.mxu0 0.0
    %320 = vmatpush.msra.mxu0 0.0
    %321 = vmatpush.msra.mxu0 0.0
    %322 = vmatpush.msra.mxu0 0.0
    %323 = vmatpush.msra.mxu0 0.0
    %324 = vmatpush.msra.mxu0 0.0
    %325 = vmatpush.msra.mxu0 0.0
    %326 = vmatpush.msra.mxu0 0.0
    %327 = vmatpush.msra.mxu0 %v151
    %328 = vmatpush.msra.mxu0 %v142
    %329 = vmatpush.msra.mxu0 %v133
    %330 = vmatpush.msra.mxu0 %v124
    %331 = vmatpush.msra.mxu0 %v115
    %332 = vmatpush.msra.mxu0 %v106
    %333 = vmatpush.msra.mxu0 %v97
    %334 = vmatpush.msra.mxu0 %v88
    %335 = vmatmul.f32.gmra.mxu0 %v177
    %v336 = vpop.f32.mrf.mxu0
    %v337 = vadd.f32 %v164, %v336
    %338 = vdwg.mxu0
    %339 = vmatpush.msra.mxu0 0.0
    %340 = vmatpush.msra.mxu0 0.0
    %341 = vmatpush.msra.mxu0 0.0
    %342 = vmatpush.msra.mxu0 0.0
    %343 = vmatpush.msra.mxu0 0.0
    %344 = vmatpush.msra.mxu0 0.0
    %345 = vmatpush.msra.mxu0 0.0
    %346 = vmatpush.msra.mxu0 0.0
    %347 = vmatpush.msra.mxu0 %v152
    %348 = vmatpush.msra.mxu0 %v143
    %349 = vmatpush.msra.mxu0 %v134
    %350 = vmatpush.msra.mxu0 %v125
    %351 = vmatpush.msra.mxu0 %v116
    %352 = vmatpush.msra.mxu0 %v107
    %353 = vmatpush.msra.mxu0 %v98
    %354 = vmatpush.msra.mxu0 %v89
    %355 = vmatmul.f32.gmra.mxu0 %v177
    %v356 = vpop.f32.mrf.mxu0
    %v357 = vadd.f32 %v165, %v356
    %358 = vdwg.mxu0
    %v359 = vmul.f32 %v197, 0.999995
    %v360 = vmul.f32 %v217, 0.999995
    %v361 = vmul.f32 %v237, 0.999995
    %v362 = vmul.f32 %v257, 0.999995
    %v363 = vmul.f32 %v277, 0.999995
    %v364 = vmul.f32 %v297, 0.999995
    %v365 = vmul.f32 %v317, 0.999995
    %v366 = vmul.f32 %v337, 0.999995
    %v367 = vmul.f32 %v357, 0.999995
    %v368 = vmax.f32 %v359, 0.0
    %v369 = vmax.f32 %v360, 0.0
    %v370 = vmax.f32 %v361, 0.0
    %v371 = vmax.f32 %v362, 0.0
    %v372 = vmax.f32 %v363, 0.0
    %v373 = vmax.f32 %v364, 0.0
    %v374 = vmax.f32 %v365, 0.0
    %v375 = vmax.f32 %v366, 0.0
    %v376 = vmax.f32 %v367, 0.0
    %v377 = vld [vmem:[#allocation8] sm:$0xff]
    %v378 = vld [vmem:[#allocation8 + $0x8] sm:$0xff]
    %v379 = vld [vmem:[#allocation8 + $0x10] sm:$0xff]
    %v380 = vld [vmem:[#allocation8 + $0x18] sm:$0xff]
    %v381 = vld [vmem:[#allocation8 + $0x20] sm:$0xff]
    %v382 = vld [vmem:[#allocation8 + $0x28] sm:$0xff]
    %v383 = vld [vmem:[#allocation8 + $0x30] sm:$0xff]
    %v384 = vld [vmem:[#allocation8 + $0x38] sm:$0xff]
    %v385 = vld [vmem:[#allocation8 + $0x40] sm:$0xff]
    %v386 = vld [vmem:[#allocation8 + $0x48] sm:$0xff]
    %v387 = vld [vmem:[#allocation8 + $0x50] sm:$0xff]
    %v388 = vld [vmem:[#allocation8 + $0x58] sm:$0xff]
    %v389 = vld [vmem:[#allocation8 + $0x60] sm:$0xff]
    %v390 = vld [vmem:[#allocation8 + $0x68] sm:$0xff]
    %v391 = vld [vmem:[#allocation8 + $0x70] sm:$0xff]
    %v392 = vld [vmem:[#allocation8 + $0x78] sm:$0xff]
    %v393 = vld [vmem:[#allocation8 + $0x80] sm:$0xff]
    %v394 = vld [vmem:[#allocation8 + $0x88] sm:$0xff]
    %v395 = vld [vmem:[#allocation8 + $0x90] sm:$0xff]
    %v396 = vld [vmem:[#allocation8 + $0x98] sm:$0xff]
    %v397 = vld [vmem:[#allocation8 + $0xa0] sm:$0xff]
    %v398 = vld [vmem:[#allocation8 + $0xa8] sm:$0xff]
    %v399 = vld [vmem:[#allocation8 + $0xb0] sm:$0xff]
    %v400 = vld [vmem:[#allocation8 + $0xb8] sm:$0xff]
    %v401 = vld [vmem:[#allocation8 + $0xc0] sm:$0xff]
    %v402 = vld [vmem:[#allocation8 + $0xc8] sm:$0xff]
    %v403 = vld [vmem:[#allocation8 + $0xd0] sm:$0xff]
    %v404 = vld [vmem:[#allocation8 + $0xd8] sm:$0xff]
    %v405 = vld [vmem:[#allocation8 + $0xe0] sm:$0xff]
    %v406 = vld [vmem:[#allocation8 + $0xe8] sm:$0xff]
    %v407 = vld [vmem:[#allocation8 + $0xf0] sm:$0xff]
    %v408 = vld [vmem:[#allocation8 + $0xf8] sm:$0xff]
    %v409 = vld [vmem:[#allocation8 + $0x100] sm:$0xff]
    %v410 = vld [vmem:[#allocation8 + $0x108] sm:$0xff]
    %v411 = vld [vmem:[#allocation8 + $0x110] sm:$0xff]
    %v412 = vld [vmem:[#allocation8 + $0x118] sm:$0xff]
    %v413 = vld [vmem:[#allocation8 + $0x120] sm:$0xff]
    %v414 = vld [vmem:[#allocation8 + $0x128] sm:$0xff]
    %v415 = vld [vmem:[#allocation8 + $0x130] sm:$0xff]
    %v416 = vld [vmem:[#allocation8 + $0x138] sm:$0xff]
    %v417 = vld [vmem:[#allocation8 + $0x140] sm:$0xff]
    %v418 = vld [vmem:[#allocation8 + $0x148] sm:$0xff]
    %v419 = vld [vmem:[#allocation8 + $0x150] sm:$0xff]
    %v420 = vld [vmem:[#allocation8 + $0x158] sm:$0xff]
    %v421 = vld [vmem:[#allocation8 + $0x160] sm:$0xff]
    %v422 = vld [vmem:[#allocation8 + $0x168] sm:$0xff]
    %v423 = vld [vmem:[#allocation8 + $0x170] sm:$0xff]
    %v424 = vld [vmem:[#allocation8 + $0x178] sm:$0xff]
    %v425 = vld [vmem:[#allocation8 + $0x180] sm:$0xff]
    %v426 = vld [vmem:[#allocation8 + $0x188] sm:$0xff]
    %v427 = vld [vmem:[#allocation8 + $0x190] sm:$0xff]
    %v428 = vld [vmem:[#allocation8 + $0x198] sm:$0xff]
    %v429 = vld [vmem:[#allocation8 + $0x1a0] sm:$0xff]
    %v430 = vld [vmem:[#allocation8 + $0x1a8] sm:$0xff]
    %v431 = vld [vmem:[#allocation8 + $0x1b0] sm:$0xff]
    %v432 = vld [vmem:[#allocation8 + $0x1b8] sm:$0xff]
    %v433 = vld [vmem:[#allocation8 + $0x1c0] sm:$0xff]
    %v434 = vld [vmem:[#allocation8 + $0x1c8] sm:$0xff]
    %v435 = vld [vmem:[#allocation8 + $0x1d0] sm:$0xff]
    %v436 = vld [vmem:[#allocation8 + $0x1d8] sm:$0xff]
    %v437 = vld [vmem:[#allocation8 + $0x1e0] sm:$0xff]
    %v438 = vld [vmem:[#allocation8 + $0x1e8] sm:$0xff]
    %v439 = vld [vmem:[#allocation8 + $0x1f0] sm:$0xff]
    %v440 = vld [vmem:[#allocation8 + $0x1f8] sm:$0xff]
    %v441 = vld [vmem:[#allocation8 + $0x200] sm:$0xff]
    %v442 = vld [vmem:[#allocation8 + $0x208] sm:$0xff]
    %v443 = vld [vmem:[#allocation8 + $0x210] sm:$0xff]
    %v444 = vld [vmem:[#allocation8 + $0x218] sm:$0xff]
    %v445 = vld [vmem:[#allocation8 + $0x220] sm:$0xff]
    %v446 = vld [vmem:[#allocation8 + $0x228] sm:$0xff]
    %v447 = vld [vmem:[#allocation8 + $0x230] sm:$0xff]
    %v448 = vld [vmem:[#allocation8 + $0x238] sm:$0xff]
    %v449 = vld [vmem:[#allocation8 + $0x240] sm:$0xff]
    %v450 = vld [vmem:[#allocation8 + $0x248] sm:$0xff]
    %v451 = vld [vmem:[#allocation8 + $0x250] sm:$0xff]
    %v452 = vld [vmem:[#allocation8 + $0x258] sm:$0xff]
    %v453 = vld [vmem:[#allocation8 + $0x260] sm:$0xff]
    %v454 = vld [vmem:[#allocation8 + $0x268] sm:$0xff]
    %v455 = vld [vmem:[#allocation8 + $0x270] sm:$0xff]
    %v456 = vld [vmem:[#allocation8 + $0x278] sm:$0xff]
    %v457 = vld [vmem:[#allocation8 + $0x280] sm:$0xff]
    %v458 = vld [vmem:[#allocation8 + $0x288] sm:$0xff]
    %v459 = vld [vmem:[#allocation8 + $0x290] sm:$0xff]
    %v460 = vld [vmem:[#allocation8 + $0x298] sm:$0xff]
    %v461 = vld [vmem:[#allocation8 + $0x2a0] sm:$0xff]
    %v462 = vld [vmem:[#allocation8 + $0x2a8] sm:$0xff]
    %v463 = vld [vmem:[#allocation8 + $0x2b0] sm:$0xff]
    %v464 = vld [vmem:[#allocation8 + $0x2b8] sm:$0xff]
    %v465 = vld [vmem:[#allocation8 + $0x2c0] sm:$0xff]
    %v466 = vld [vmem:[#allocation8 + $0x2c8] sm:$0xff]
    %v467 = vld [vmem:[#allocation8 + $0x2d0] sm:$0xff]
    %v468 = vld [vmem:[#allocation8 + $0x2d8] sm:$0xff]
    %v469 = vld [vmem:[#allocation8 + $0x2e0] sm:$0xff]
    %v470 = vld [vmem:[#allocation8 + $0x2e8] sm:$0xff]
    %v471 = vld [vmem:[#allocation8 + $0x2f0] sm:$0xff]
    %v472 = vld [vmem:[#allocation8 + $0x2f8] sm:$0xff]
    %v473 = vld [vmem:[#allocation8 + $0x300] sm:$0xff]
    %v474 = vld [vmem:[#allocation8 + $0x308] sm:$0xff]
    %v475 = vld [vmem:[#allocation8 + $0x310] sm:$0xff]
    %v476 = vld [vmem:[#allocation8 + $0x318] sm:$0xff]
    %v477 = vld [vmem:[#allocation8 + $0x320] sm:$0xff]
    %v478 = vld [vmem:[#allocation8 + $0x328] sm:$0xff]
    %v479 = vld [vmem:[#allocation8 + $0x330] sm:$0xff]
    %v480 = vld [vmem:[#allocation8 + $0x338] sm:$0xff]
    %v481 = vld [vmem:[#allocation8 + $0x340] sm:$0xff]
    %v482 = vld [vmem:[#allocation8 + $0x348] sm:$0xff]
    %v483 = vld [vmem:[#allocation8 + $0x350] sm:$0xff]
    %v484 = vld [vmem:[#allocation8 + $0x358] sm:$0xff]
    %v485 = vld [vmem:[#allocation8 + $0x360] sm:$0xff]
    %v486 = vld [vmem:[#allocation8 + $0x368] sm:$0xff]
    %v487 = vld [vmem:[#allocation8 + $0x370] sm:$0xff]
    %v488 = vld [vmem:[#allocation8 + $0x378] sm:$0xff]
    %v489 = vld [vmem:[#allocation8 + $0x380] sm:$0xff]
    %v490 = vld [vmem:[#allocation8 + $0x388] sm:$0xff]
    %v491 = vld [vmem:[#allocation8 + $0x390] sm:$0xff]
    %v492 = vld [vmem:[#allocation8 + $0x398] sm:$0xff]
    %v493 = vld [vmem:[#allocation8 + $0x3a0] sm:$0xff]
    %v494 = vld [vmem:[#allocation8 + $0x3a8] sm:$0xff]
    %v495 = vld [vmem:[#allocation8 + $0x3b0] sm:$0xff]
    %v496 = vld [vmem:[#allocation8 + $0x3b8] sm:$0xff]
    %v497 = vld [vmem:[#allocation8 + $0x3c0] sm:$0xff]
    %v498 = vld [vmem:[#allocation8 + $0x3c8] sm:$0xff]
    %v499 = vld [vmem:[#allocation8 + $0x3d0] sm:$0xff]
    %v500 = vld [vmem:[#allocation8 + $0x3d8] sm:$0xff]
    %v501 = vld [vmem:[#allocation8 + $0x3e0] sm:$0xff]
    %v502 = vld [vmem:[#allocation8 + $0x3e8] sm:$0xff]
    %v503 = vld [vmem:[#allocation8 + $0x3f0] sm:$0xff]
    %v504 = vld [vmem:[#allocation8 + $0x3f8] sm:$0xff]
    %v505 = vld [vmem:[#allocation8 + $0x400] sm:$0xff]
    %v506 = vld [vmem:[#allocation8 + $0x408] sm:$0xff]
    %v507 = vld [vmem:[#allocation8 + $0x410] sm:$0xff]
    %v508 = vld [vmem:[#allocation8 + $0x418] sm:$0xff]
    %v509 = vld [vmem:[#allocation8 + $0x420] sm:$0xff]
    %v510 = vld [vmem:[#allocation8 + $0x428] sm:$0xff]
    %v511 = vld [vmem:[#allocation8 + $0x430] sm:$0xff]
    %v512 = vld [vmem:[#allocation8 + $0x438] sm:$0xff]
    %v513 = vld [vmem:[#allocation8 + $0x440] sm:$0xff]
    %v514 = vld [vmem:[#allocation8 + $0x448] sm:$0xff]
    %v515 = vld [vmem:[#allocation8 + $0x450] sm:$0xff]
    %v516 = vld [vmem:[#allocation8 + $0x458] sm:$0xff]
    %v517 = vld [vmem:[#allocation8 + $0x460] sm:$0xff]
    %v518 = vld [vmem:[#allocation8 + $0x468] sm:$0xff]
    %v519 = vld [vmem:[#allocation8 + $0x470] sm:$0xff]
    %v520 = vld [vmem:[#allocation8 + $0x478] sm:$0xff]
    %v521 = vld [vmem:[%s4] sm:$0x1]
    %v523 = vperm.slane %v521, 0
    %525 = vmatpush.msra.mxu0 %v392
    %526 = vmatpush.msra.mxu0 %v391
    %527 = vmatpush.msra.mxu0 %v390
    %528 = vmatpush.msra.mxu0 %v389
    %529 = vmatpush.msra.mxu0 %v388
    %530 = vmatpush.msra.mxu0 %v387
    %531 = vmatpush.msra.mxu0 %v386
    %532 = vmatpush.msra.mxu0 %v385
    %533 = vmatpush.msra.mxu0 %v384
    %534 = vmatpush.msra.mxu0 %v383
    %535 = vmatpush.msra.mxu0 %v382
    %536 = vmatpush.msra.mxu0 %v381
    %537 = vmatpush.msra.mxu0 %v380
    %538 = vmatpush.msra.mxu0 %v379
    %539 = vmatpush.msra.mxu0 %v378
    %540 = vmatpush.msra.mxu0 %v377
    %541 = vmatmul.f32.gmra.mxu0 %v368
    %v542 = vpop.f32.mrf.mxu0
    %v543 = vadd.f32 %v523, %v542
    %544 = vdwg.mxu0
    %545 = vmatpush.msra.mxu0 %v408
    %546 = vmatpush.msra.mxu0 %v407
    %547 = vmatpush.msra.mxu0 %v406
    %548 = vmatpush.msra.mxu0 %v405
    %549 = vmatpush.msra.mxu0 %v404
    %550 = vmatpush.msra.mxu0 %v403
    %551 = vmatpush.msra.mxu0 %v402
    %552 = vmatpush.msra.mxu0 %v401
    %553 = vmatpush.msra.mxu0 %v400
    %554 = vmatpush.msra.mxu0 %v399
    %555 = vmatpush.msra.mxu0 %v398
    %556 = vmatpush.msra.mxu0 %v397
    %557 = vmatpush.msra.mxu0 %v396
    %558 = vmatpush.msra.mxu0 %v395
    %559 = vmatpush.msra.mxu0 %v394
    %560 = vmatpush.msra.mxu0 %v393
    %561 = vmatmul.f32.gmra.mxu0 %v369
    %v562 = vpop.f32.mrf.mxu0
    %v563 = vadd.f32 %v543, %v562
    %564 = vdwg.mxu0
    %565 = vmatpush.msra.mxu0 %v424
    %566 = vmatpush.msra.mxu0 %v423
    %567 = vmatpush.msra.mxu0 %v422
    %568 = vmatpush.msra.mxu0 %v421
    %569 = vmatpush.msra.mxu0 %v420
    %570 = vmatpush.msra.mxu0 %v419
    %571 = vmatpush.msra.mxu0 %v418
    %572 = vmatpush.msra.mxu0 %v417
    %573 = vmatpush.msra.mxu0 %v416
    %574 = vmatpush.msra.mxu0 %v415
    %575 = vmatpush.msra.mxu0 %v414
    %576 = vmatpush.msra.mxu0 %v413
    %577 = vmatpush.msra.mxu0 %v412
    %578 = vmatpush.msra.mxu0 %v411
    %579 = vmatpush.msra.mxu0 %v410
    %580 = vmatpush.msra.mxu0 %v409
    %581 = vmatmul.f32.gmra.mxu0 %v370
    %v582 = vpop.f32.mrf.mxu0
    %v583 = vadd.f32 %v563, %v582
    %584 = vdwg.mxu0
    %585 = vmatpush.msra.mxu0 %v440
    %586 = vmatpush.msra.mxu0 %v439
    %587 = vmatpush.msra.mxu0 %v438
    %588 = vmatpush.msra.mxu0 %v437
    %589 = vmatpush.msra.mxu0 %v436
    %590 = vmatpush.msra.mxu0 %v435
    %591 = vmatpush.msra.mxu0 %v434
    %592 = vmatpush.msra.mxu0 %v433
    %593 = vmatpush.msra.mxu0 %v432
    %594 = vmatpush.msra.mxu0 %v431
    %595 = vmatpush.msra.mxu0 %v430
    %596 = vmatpush.msra.mxu0 %v429
    %597 = vmatpush.msra.mxu0 %v428
    %598 = vmatpush.msra.mxu0 %v427
    %599 = vmatpush.msra.mxu0 %v426
    %600 = vmatpush.msra.mxu0 %v425
    %601 = vmatmul.f32.gmra.mxu0 %v371
    %v602 = vpop.f32.mrf.mxu0
    %v603 = vadd.f32 %v583, %v602
    %604 = vdwg.mxu0
    %605 = vmatpush.msra.mxu0 %v456
    %606 = vmatpush.msra.mxu0 %v455
    %607 = vmatpush.msra.mxu0 %v454
    %608 = vmatpush.msra.mxu0 %v453
    %609 = vmatpush.msra.mxu0 %v452
    %610 = vmatpush.msra.mxu0 %v451
    %611 = vmatpush.msra.mxu0 %v450
    %612 = vmatpush.msra.mxu0 %v449
    %613 = vmatpush.msra.mxu0 %v448
    %614 = vmatpush.msra.mxu0 %v447
    %615 = vmatpush.msra.mxu0 %v446
    %616 = vmatpush.msra.mxu0 %v445
    %617 = vmatpush.msra.mxu0 %v444
    %618 = vmatpush.msra.mxu0 %v443
    %619 = vmatpush.msra.mxu0 %v442
    %620 = vmatpush.msra.mxu0 %v441
    %621 = vmatmul.f32.gmra.mxu0 %v372
    %v622 = vpop.f32.mrf.mxu0
    %v623 = vadd.f32 %v603, %v622
    %624 = vdwg.mxu0
    %625 = vmatpush.msra.mxu0 %v472
    %626 = vmatpush.msra.mxu0 %v471
    %627 = vmatpush.msra.mxu0 %v470
    %628 = vmatpush.msra.mxu0 %v469
    %629 = vmatpush.msra.mxu0 %v468
    %630 = vmatpush.msra.mxu0 %v467
    %631 = vmatpush.msra.mxu0 %v466
    %632 = vmatpush.msra.mxu0 %v465
    %633 = vmatpush.msra.mxu0 %v464
    %634 = vmatpush.msra.mxu0 %v463
    %635 = vmatpush.msra.mxu0 %v462
    %636 = vmatpush.msra.mxu0 %v461
    %637 = vmatpush.msra.mxu0 %v460
    %638 = vmatpush.msra.mxu0 %v459
    %639 = vmatpush.msra.mxu0 %v458
    %640 = vmatpush.msra.mxu0 %v457
    %641 = vmatmul.f32.gmra.mxu0 %v373
    %v642 = vpop.f32.mrf.mxu0
    %v643 = vadd.f32 %v623, %v642
    %644 = vdwg.mxu0
    %645 = vmatpush.msra.mxu0 %v488
    %646 = vmatpush.msra.mxu0 %v487
    %647 = vmatpush.msra.mxu0 %v486
    %648 = vmatpush.msra.mxu0 %v485
    %649 = vmatpush.msra.mxu0 %v484
    %650 = vmatpush.msra.mxu0 %v483
    %651 = vmatpush.msra.mxu0 %v482
    %652 = vmatpush.msra.mxu0 %v481
    %653 = vmatpush.msra.mxu0 %v480
    %654 = vmatpush.msra.mxu0 %v479
    %655 = vmatpush.msra.mxu0 %v478
    %656 = vmatpush.msra.mxu0 %v477
    %657 = vmatpush.msra.mxu0 %v476
    %658 = vmatpush.msra.mxu0 %v475
    %659 = vmatpush.msra.mxu0 %v474
    %660 = vmatpush.msra.mxu0 %v473
    %661 = vmatmul.f32.gmra.mxu0 %v374
    %v662 = vpop.f32.mrf.mxu0
    %v663 = vadd.f32 %v643, %v662
    %664 = vdwg.mxu0
    %665 = vmatpush.msra.mxu0 %v504
    %666 = vmatpush.msra.mxu0 %v503
    %667 = vmatpush.msra.mxu0 %v502
    %668 = vmatpush.msra.mxu0 %v501
    %669 = vmatpush.msra.mxu0 %v500
    %670 = vmatpush.msra.mxu0 %v499
    %671 = vmatpush.msra.mxu0 %v498
    %672 = vmatpush.msra.mxu0 %v497
    %673 = vmatpush.msra.mxu0 %v496
    %674 = vmatpush.msra.mxu0 %v495
    %675 = vmatpush.msra.mxu0 %v494
    %676 = vmatpush.msra.mxu0 %v493
    %677 = vmatpush.msra.mxu0 %v492
    %678 = vmatpush.msra.mxu0 %v491
    %679 = vmatpush.msra.mxu0 %v490
    %680 = vmatpush.msra.mxu0 %v489
    %681 = vmatmul.f32.gmra.mxu0 %v375
    %v682 = vpop.f32.mrf.mxu0
    %v683 = vadd.f32 %v663, %v682
    %684 = vdwg.mxu0
    %685 = vmatpush.msra.mxu0 %v520
    %686 = vmatpush.msra.mxu0 %v519
    %687 = vmatpush.msra.mxu0 %v518
    %688 = vmatpush.msra.mxu0 %v517
    %689 = vmatpush.msra.mxu0 %v516
    %690 = vmatpush.msra.mxu0 %v515
    %691 = vmatpush.msra.mxu0 %v514
    %692 = vmatpush.msra.mxu0 %v513
    %693 = vmatpush.msra.mxu0 %v512
    %694 = vmatpush.msra.mxu0 %v511
    %695 = vmatpush.msra.mxu0 %v510
    %696 = vmatpush.msra.mxu0 %v509
    %697 = vmatpush.msra.mxu0 %v508
    %698 = vmatpush.msra.mxu0 %v507
    %699 = vmatpush.msra.mxu0 %v506
    %700 = vmatpush.msra.mxu0 %v505
    %701 = vmatmul.f32.gmra.mxu0 %v376
    %v702 = vpop.f32.mrf.mxu0
    %v703 = vadd.f32 %v683, %v702
    %704 = vdwg.mxu0
    %v705 = vmul.f32 %v703, 0.999995
    %v706 = vmax.f32 %v705, 0.0
    %v707 = vlaneseq
    %v708 = vand.u32 %v707, 127
    %vm709 = vcmp.eq.s32.totalorder %v708, 0
    %v710 = vsel %vm709, 1.0, %v706
    %711 = vst [vmem:[#allocation10] sm:$0xff] %v710
    // Predicated region
    $region38: #{tpu_custom_call.1} parent=1 // pred_check
      _
    $region39: #{tpu_custom_call.1} parent=1 // pred_check_branch
      %713 = sbr.rel (0) target = $region41
    $region40: #{tpu_custom_call.1} parent=1 // pred_region
      %715 = vsyncadd [#allocation4], 0
      %s717 = sshll.u32 [#allocation10], 4
      %s718 = int_to_ptr.vmem [resolvable:$true] %s717
      %s719 = sshll.u32 %s5, 4
      %s720 = int_to_ptr.hbm [resolvable:$true] %s719
      %722 = dma.vmem_to_hbm [thread:$0]  %s718, 128, %s720, [#allocation4]
    $region41: #{tpu_custom_call.1} parent=1 // pred_fallthru
      _
    // Predicated region
    $region42: #{tpu_custom_call.1} parent=1 // pred_check
      _
    $region43: #{tpu_custom_call.1} parent=1 // pred_check_branch
      %724 = sbr.rel (0) target = $region45
    $region44: #{tpu_custom_call.1} parent=1 // pred_region
      %726 = dma.done [#allocation4], 128
    $region45: #{tpu_custom_call.1} parent=1 // pred_fallthru
      _
    %727 = vsyncpa [#allocation3], 1
    %728 = vsyncpa [#allocation6], 1
    %729 = vsyncpa [#allocation9], 1
    %730 = vsyncpa [#allocation4], 1

</llo_original>
